<compile_context>
chip_gen: v7x
topology: tpu7x:2x2x1
jax: 0.10.0
libtpu: 0.0.40
codegen_flags: <defaults>
</compile_context>

<pallas_src>
import functools

import jax
import jax.numpy as jnp
from jax.experimental import pallas as pl
from jax.experimental.pallas import tpu as pltpu


# ---------------------------------------------------------------------------
# Pallas kernel: EnsRec core compute (one batch tile per grid step)
# ---------------------------------------------------------------------------
def _ensrec_kernel(div_scale, use_div, K,
                   bm_ref, w_ref, b_ref, pref_ref, lab_ref, out_ref):
    # bm_ref  : [K, TB, LEp] bf16  time-flattened base-model activations
    # w_ref   : [LEp, Hp]    bf16  llm_projection weight, time weights folded in
    # b_ref   : [1, Hp]      f32   bias pre-scaled by sum(time_weights)
    # pref_ref: [TB, Hp]     f32   user preference (H zero-padded to Hp)
    # lab_ref : [TB, 128]    f32   lanes 0..K-1 = pos_label, K..2K-1 = neg_label
    # out_ref : [TB, 128]    f32   lane 0 = per-row loss, lanes 1..K = wgts
    w = w_ref[...]            # bf16, fed straight to the MXU
    b = b_ref[...]            # f32
    pref = pref_ref[...]      # f32

    # Per base model: one bf16 MXU matmul (contraction = L*E, f32 accumulate)
    # and a VPU multiply + lane reduce for the preference score.  K is tiny
    # and static, so the python loop fully unrolls.
    emb = []
    score = []
    for k in range(K):
        e_k = jnp.dot(bm_ref[k], w, preferred_element_type=jnp.float32) + b  # [TB, Hp]
        emb.append(e_k)
        score.append(jnp.sum(e_k * pref, axis=-1, keepdims=True))            # [TB, 1]

    # Softmax over the K base models, all f32 on the VPU/EUP (v5e-safe).
    m = score[0]
    for k in range(1, K):
        m = jnp.maximum(m, score[k])
    ex = [jnp.exp(s - m) for s in score]
    denom = ex[0]
    for k in range(1, K):
        denom = denom + ex[k]
    inv = pl.reciprocal(denom, approx=True)      # divide on the (idle) EUP slot
    wgt = [e * inv for e in ex]                  # K x [TB, 1]
    wgts_cat = jnp.concatenate(wgt, axis=1)      # [TB, K]

    # BPR loss, per-row partial (reduced outside the kernel).
    lab = lab_ref[...]
    pos_s = jnp.sum(lab[:, 0:K] * wgts_cat, axis=1, keepdims=True)        # [TB, 1]
    neg_s = jnp.sum(lab[:, K:2 * K] * wgts_cat, axis=1, keepdims=True)    # [TB, 1]
    diff = pos_s - neg_s
    # numerically stable log(sigmoid(d)) = min(d, 0) - log(1 + exp(-|d|))
    logsig = jnp.minimum(diff, 0.0) - jnp.log(1.0 + jnp.exp(-jnp.abs(diff)))
    row_loss = -logsig                                                     # [TB, 1]

    if use_div:
        # Diversity term: Gram entries via VPU multiplies + lane reduces over
        # Hp (no tiny batched MXU ops); gram and cov_wgt are symmetric so only
        # j<k pairs are computed and doubled.  cov_mask = 1 - eye(K) is the
        # off-diagonal structure, hard-coded here.
        # TODO(synk): torch.detach(wgts) only matters for the backward pass; a
        # custom VJP with stop_gradient on the wgt factor is needed if this
        # kernel is ever differentiated.
        div = jnp.zeros_like(row_loss)
        for j in range(K):
            for k in range(j + 1, K):
                g = jnp.sum(emb[j] * emb[k], axis=-1, keepdims=True)       # [TB, 1]
                div = div + (g * g) * (wgt[j] + wgt[k])
        row_loss = row_loss + (2.0 * div_scale) * div

    # Single lane-dense store: [loss | wgts | zero pad] -> [TB, 128].
    pad = jnp.zeros((row_loss.shape[0], 128 - 1 - K), jnp.float32)
    out_ref[...] = jnp.concatenate([row_loss, wgts_cat, pad], axis=1)


# ---------------------------------------------------------------------------
# Per-generation VMEM budget and batch-tile selection (lane-dense block sizes)
# ---------------------------------------------------------------------------
def _vmem_limit_bytes():
    cap = None
    try:
        info = pltpu.get_tpu_info()
        cap = getattr(info, "vmem_capacity_bytes", None)
    except Exception:
        cap = None
    if not cap:
        cap = 64 << 20            # conservative fallback: v7x-sized VMEM
    # v7x (64 MiB) -> 32 MiB limit; v5e/v6e (128 MiB) -> 64 MiB limit.
    return int(min(max(cap // 2, 32 << 20), 96 << 20))


def _pick_batch_tile(B, K, LEp, Hp, vmem_limit_bytes):
    """Largest multiple-of-8 batch tile that fits the VMEM budget, capped so
    the grid keeps >= 2 parallel steps (both v7x TensorCores stay busy)."""
    # Resident (grid-invariant) operands: folded weight (bf16) + bias, x2 buffers.
    const_bytes = 2 * (LEp * Hp * 2 + Hp * 4)
    # Per batch-row VMEM: double-buffered streamed blocks + f32 intermediates.
    per_row = (2 * (K * LEp * 2        # activation tile (bf16)
                    + Hp * 4           # preference
                    + 128 * 4          # packed labels slab
                    + 128 * 4)         # packed output slab
               + (K + 3) * Hp * 4)     # emb_k + live f32 temporaries / spill
    budget = vmem_limit_bytes // 2 - const_bytes
    cap = max(8, budget // per_row)
    two_step_cap = max(8, ((-(-B // 2)) + 7) // 8 * 8) if B > 8 else 8
    tb = max(8, min(cap, 1024, two_step_cap))
    return (tb // 8) * 8


# ---------------------------------------------------------------------------
# Wrapper: layout prep + pallas_call
# ---------------------------------------------------------------------------
def ensrec_core(bm_llm, proj_w, proj_b, time_w, preference,
                pos_label, neg_label, *, div_tradeoff, use_div, batch_tile=None):
    """EnsRec hot path as a batch-tiled, pipelined, lane-dense Pallas kernel."""
    B, K, L, E = bm_llm.shape
    E_w, H = proj_w.shape
    assert E_w == E and 2 * K <= 128 and K + 1 <= 128
    LE = L * E
    LEp = pl.cdiv(LE, 128) * 128       # lane-dense contraction dim
    Hp = pl.cdiv(H, 128) * 128         # lane-dense hidden dim

    vmem_limit = _vmem_limit_bytes()
    if batch_tile is None:
        TB = _pick_batch_tile(B, K, LEp, Hp, vmem_limit)
    else:
        TB = max(8, (int(batch_tile) + 7) // 8 * 8)
    Bp = pl.cdiv(B, TB) * TB           # pad batch to a TB multiple (rows sliced off)
    grid = (Bp // TB,)

    tw = time_w.astype(jnp.float32)                               # [L]
    # Fold the time-weighted L-reduction into the projection weight:
    #   sum_l tw_l*(x_l @ W + b) == x_flat @ W_tw + sum(tw)*b,
    #   with W_tw[l*E+e, h] = tw[l] * W[e, h].
    w_tw = (tw[:, None, None] * proj_w.astype(jnp.float32)[None, :, :]).reshape(LE, H)
    w_tw = jnp.pad(w_tw, ((0, LEp - LE), (0, Hp - H))).astype(jnp.bfloat16)
    b_eff = jnp.pad((jnp.sum(tw) * proj_b.astype(jnp.float32)).reshape(1, H),
                    ((0, 0), (0, Hp - H)))

    # Big activation: [B,K,L,E] -> lane-dense [K, Bp, LEp] bf16.  The transpose
    # + pad + cast fuse into one HBM copy outside the kernel; every kernel
    # block is then a dense (TB, LEp) slab per base model (no minor-dim padding).
    bm = bm_llm.reshape(B, K, LE).transpose(1, 0, 2)
    bm = jnp.pad(bm, ((0, 0), (0, Bp - B), (0, LEp - LE))).astype(jnp.bfloat16)

    pref = jnp.pad(preference.astype(jnp.float32),
                   ((0, Bp - B), (0, Hp - H)))
    # pos/neg labels packed into one lane-dense input slab.
    labels = jnp.zeros((Bp, 128), jnp.float32)
    labels = labels.at[:B, 0:K].set(pos_label.astype(jnp.float32))
    labels = labels.at[:B, K:2 * K].set(neg_label.astype(jnp.float32))

    # div_scale = div_tradeoff / (B*K*K) so that summing per-row partials == mean.
    div_scale = float(div_tradeoff) / float(B * K * K)
    kernel = functools.partial(_ensrec_kernel, div_scale, bool(use_div), K)

    out = pl.pallas_call(
        kernel,
        grid_spec=pltpu.PrefetchScalarGridSpec(
            num_scalar_prefetch=0,
            grid=grid,
            in_specs=[
                pl.BlockSpec((K, TB, LEp), lambda i: (0, i, 0)),   # activations
                pl.BlockSpec((LEp, Hp), lambda i: (0, 0)),         # tw-folded weight
                pl.BlockSpec((1, Hp), lambda i: (0, 0)),           # scaled bias
                pl.BlockSpec((TB, Hp), lambda i: (i, 0)),          # preference
                pl.BlockSpec((TB, 128), lambda i: (i, 0)),         # packed labels
            ],
            out_specs=pl.BlockSpec((TB, 128), lambda i: (i, 0)),   # packed out slab
        ),
        out_shape=jax.ShapeDtypeStruct((Bp, 128), jnp.float32),
        compiler_params=pltpu.CompilerParams(
            dimension_semantics=("parallel",),     # megacore-shardable on v7x
            vmem_limit_bytes=vmem_limit),
    )(bm, w_tw, b_eff, pref, labels)

    loss = jnp.sum(out[:B, 0])         # reduce per-row partials outside the kernel
    wgts = out[:B, 1:1 + K]
    return loss, wgts


# ---------------------------------------------------------------------------
# Plain-JAX glue: deterministic stand-ins for the undefined sub-modules
# ---------------------------------------------------------------------------
def init_params(key, n_user, n_item, e_llm, hidden):
    k = jax.random.split(key, 6)
    return {
        'user_emb': 0.01 * jax.random.normal(k[0], (n_user, hidden), jnp.float32),
        'item_emb': 0.02 * jax.random.normal(k[1], (n_item, e_llm), jnp.float32),
        # TODO(synk): ItemTower is a pretrained-LLM transformer in the original
        # code; replaced by an embedding table + linear stand-in.
        'item_proj_w': 0.05 * jax.random.normal(k[2], (e_llm, hidden), jnp.float32),
        'item_proj_b': jnp.zeros((hidden,), jnp.float32),
        'llm_proj_w': 0.05 * jax.random.normal(k[3], (e_llm, hidden), jnp.float32),
        'llm_proj_b': 0.01 * jax.random.normal(k[4], (hidden,), jnp.float32),
    }


def item_tower(params, ids, mode, maxlen):
    emb = params['item_emb'][ids]
    if mode == 'single_item':                           # [B] -> [B, H]
        return emb @ params['item_proj_w'] + params['item_proj_b']
    if mode == 'user_seq':                              # [B, L] -> [B, L, H]
        return emb @ params['item_proj_w'] + params['item_proj_b']
    if mode == 'base_model':
        # TODO(synk): the LLM "focus" attention over the 100 candidates per base
        # model is not defined in the snippet; stand-in keeps the first `maxlen`
        # candidates so the output is [B, K, maxlen, E_llm] as the forward requires.
        return params['item_emb'][ids[..., :maxlen]]
    raise ValueError(mode)


def dien(user_interaction, target_emb):
    # TODO(synk): DIEN (GRU + AUGRU interest evolution) replaced by a
    # parameter-free target-attention pooling stand-in with matching shapes.
    h = user_interaction.shape[-1]
    scores = jnp.einsum('blh,bh->bl', user_interaction, target_emb) / jnp.sqrt(float(h))
    attn = jax.nn.softmax(scores, axis=-1)
    return jnp.einsum('bl,blh->bh', attn, user_interaction)


def build_core_inputs(params, batch, maxlen):
    user_emb = params['user_emb'][batch['user_id']]                       # [B, H]
    user_interaction = item_tower(params, batch['user_seq'], 'user_seq', maxlen)
    target_emb = item_tower(params, batch['pos_item'], 'single_item', maxlen)
    preference = dien(user_interaction, target_emb) + user_emb            # [B, H]
    base_model_focus_llm = item_tower(params, batch['base_model_preds'],
                                      'base_model', maxlen)               # [B, K, L, E]
    time_w = 1.0 / jnp.log2(jnp.arange(maxlen, dtype=jnp.float32) + 2.0)  # [L]
    return base_model_focus_llm, preference, time_w


def ensrec_forward(params, batch, args, maxlen, batch_tile=None):
    bm_llm, preference, time_w = build_core_inputs(params, batch, maxlen)
    loss, wgts = ensrec_core(
        bm_llm, params['llm_proj_w'], params['llm_proj_b'], time_w, preference,
        batch['pos_label'], batch['neg_label'],
        div_tradeoff=args['div_tradeoff'], use_div=args['use_div'],
        batch_tile=batch_tile)
    if args['use_reg']:
        # F.mse_loss(p, zeros) == mean(p**2), summed over trainable params.
        reg = sum(jnp.mean(p ** 2) for p in jax.tree_util.tree_leaves(params))
        loss = loss + args['reg_tradeoff'] * reg
    # TODO(synk): the is_test branch (wgts @ all_item_scores) is not implemented.
    return loss, wgts


# Pure-JAX reference of the kernel math in the ORIGINAL op order (full f32).
def core_reference(bm_llm, w, b, time_w, pref, pos, neg, div_tradeoff, use_div):
    proj = jnp.einsum('bkle,eh->bklh', bm_llm, w) + b
    basemodel_emb = jnp.sum(time_w.reshape(1, 1, -1, 1) * proj, axis=2)
    wgts_org = jnp.einsum('bkh,bh->bk', basemodel_emb, pref)
    wgts = jax.nn.softmax(wgts_org, axis=-1)
    pos_s = jnp.sum(pos * wgts, axis=1)
    neg_s = jnp.sum(neg * wgts, axis=1)
    loss = -jnp.sum(jax.nn.log_sigmoid(pos_s - neg_s))
    if use_div:
        K = bm_llm.shape[1]
        cov_mask = 1.0 - jnp.eye(K, dtype=jnp.float32)
        cov_wgt = wgts[:, None, :] + wgts[:, :, None]
        cov_div = jnp.einsum('bkh,bjh->bkj', basemodel_emb, basemodel_emb) ** 2
        loss = loss + div_tradeoff * jnp.mean(cov_mask[None] * cov_div * cov_wgt)
    return loss, wgts


if __name__ == "__main__":
    B, K, L = 16, 3, 8         # batch, n_base_model, seq_max_len
    E_LLM, HIDDEN = 16, 32     # LLM embedding dim, hidden_dim  (L*E = 128)
    N_USER, N_ITEM, N_PRED = 10, 50, 100

    args = {'lr': 1e-3, 'hidden_dim': HIDDEN,
            'use_div': True, 'div_tradeoff': 0.1,
            'use_reg': True, 'reg_tradeoff': 1e-4}

    key = jax.random.PRNGKey(0)
    kp, k1, k2, k3, k4, k5, k6 = jax.random.split(key, 7)
    params = init_params(kp, N_USER, N_ITEM, E_LLM, HIDDEN)

    batch = {
        'user_id': jax.random.randint(k1, (B,), 0, N_USER),
        'user_seq': jax.random.randint(k2, (B, L), 0, N_ITEM),
        'pos_item': jax.random.randint(k3, (B,), 0, N_ITEM),
        # base-model predictions: K base models x 100 candidate item ids each
        'base_model_preds': jax.random.randint(k4, (B, K, N_PRED), 0, N_ITEM),
        # per-base-model scores of the pos/neg item (shape [B, K])
        'pos_label': jax.random.uniform(k5, (B, K), jnp.float32),
        'neg_label': jax.random.uniform(k6, (B, K), jnp.float32),
    }

    # Full forward (auto-picked batch tile -> 2 parallel grid steps for B=16).
    loss, wgts = ensrec_forward(params, batch, args, L)
    jax.block_until_ready((loss, wgts))
    assert bool(jnp.isfinite(loss)) and wgts.shape == (B, K)

    # Cross-check the kernel against a pure-JAX f32 reference in the original
    # op order (tolerance covers the bf16 activation/weight quantization, the
    # time-weight fold and the approximate EUP reciprocal in the softmax).
    bm_llm, preference, time_w = build_core_inputs(params, batch, L)
    loss_k, wgts_k = ensrec_core(
        bm_llm, params['llm_proj_w'], params['llm_proj_b'], time_w, preference,
        batch['pos_label'], batch['neg_label'],
        div_tradeoff=args['div_tradeoff'], use_div=args['use_div'], batch_tile=8)
    loss_r, wgts_r = core_reference(
        bm_llm, params['llm_proj_w'], params['llm_proj_b'], time_w, preference,
        batch['pos_label'], batch['neg_label'],
        args['div_tradeoff'], args['use_div'])
    jax.block_until_ready((loss_k, wgts_k, loss_r, wgts_r))

    assert jnp.allclose(wgts_k, wgts_r, rtol=2e-3, atol=2e-3), "wgts mismatch"
    assert jnp.allclose(loss_k, loss_r, rtol=2e-3, atol=2e-3), "loss mismatch"

    print("KERNEL_OK")
</pallas_src>

<mosaic_0001>
module attributes {stable_mosaic.version = 11 : i64} {
  func.func @_ensrec_kernel(%arg0: i32, %arg1: memref<3x8x128xbf16, #tpu.memory_space<vmem>>, %arg2: memref<128x128xbf16, #tpu.memory_space<vmem>>, %arg3: memref<1x128xf32, #tpu.memory_space<vmem>>, %arg4: memref<8x128xf32, #tpu.memory_space<vmem>>, %arg5: memref<8x128xf32, #tpu.memory_space<vmem>>, %arg6: memref<8x128xf32, #tpu.memory_space<vmem>>) attributes {dimension_semantics = [#tpu.dimension_semantics<parallel>], iteration_bounds = array<i64: 2>, scalar_prefetch = 0 : i64, scratch_operands = 0 : i64, tpu.core_type = #tpu.core_type<tc>, window_params = [{transform_indices = @transform_0, window_bounds = array<i64: 3, 8, 128>}, {pipeline_mode = #tpu.pipeline_mode<synchronous>, transform_indices = @transform_1, window_bounds = array<i64: 128, 128>}, {pipeline_mode = #tpu.pipeline_mode<synchronous>, transform_indices = @transform_2, window_bounds = array<i64: 1, 128>}, {transform_indices = @transform_3, window_bounds = array<i64: 8, 128>}, {transform_indices = @transform_4, window_bounds = array<i64: 8, 128>}, {transform_indices = @transform_5, window_bounds = array<i64: 8, 128>}]} {
    %c0 = arith.constant 0 : index
    %c0_0 = arith.constant 0 : index
    %0 = vector.load %arg2[%c0, %c0_0] : memref<128x128xbf16, #tpu.memory_space<vmem>>, vector<128x128xbf16>
    %c0_1 = arith.constant 0 : index
    %c0_2 = arith.constant 0 : index
    %1 = vector.load %arg3[%c0_1, %c0_2] : memref<1x128xf32, #tpu.memory_space<vmem>>, vector<1x128xf32>
    %c0_3 = arith.constant 0 : index
    %c0_4 = arith.constant 0 : index
    %2 = vector.load %arg4[%c0_3, %c0_4] : memref<8x128xf32, #tpu.memory_space<vmem>>, vector<8x128xf32>
    %c0_5 = arith.constant 0 : index
    %c0_6 = arith.constant 0 : index
    %c0_7 = arith.constant 0 : index
    %3 = vector.load %arg1[%c0_5, %c0_6, %c0_7] : memref<3x8x128xbf16, #tpu.memory_space<vmem>>, vector<1x8x128xbf16>
    %4 = vector.shape_cast %3 : vector<1x8x128xbf16> to vector<8x128xbf16>
    %cst = arith.constant dense<0.000000e+00> : vector<8x128xf32>
    %5 = tpu.matmul %4, %0, %cst {dimension_numbers = #tpu.dot_dimension_numbers<[1], [0], [0], [1], [0, 0, 1, 1], [], []>} : vector<8x128xbf16>, vector<128x128xbf16>, vector<8x128xf32> -> vector<8x128xf32>
    %6 = vector.broadcast %1 : vector<1x128xf32> to vector<8x128xf32>
    %7 = arith.addf %5, %6 : vector<8x128xf32>
    %8 = arith.mulf %7, %2 : vector<8x128xf32>
    %cst_8 = arith.constant dense<0.000000e+00> : vector<8xf32>
    %9 = vector.multi_reduction <add>, %8, %cst_8 [1] : vector<8x128xf32> to vector<8xf32>
    %10 = vector.shape_cast %9 : vector<8xf32> to vector<8x1xf32>
    %c1 = arith.constant 1 : index
    %c0_9 = arith.constant 0 : index
    %c0_10 = arith.constant 0 : index
    %11 = vector.load %arg1[%c1, %c0_9, %c0_10] : memref<3x8x128xbf16, #tpu.memory_space<vmem>>, vector<1x8x128xbf16>
    %12 = vector.shape_cast %11 : vector<1x8x128xbf16> to vector<8x128xbf16>
    %cst_11 = arith.constant dense<0.000000e+00> : vector<8x128xf32>
    %13 = tpu.matmul %12, %0, %cst_11 {dimension_numbers = #tpu.dot_dimension_numbers<[1], [0], [0], [1], [0, 0, 1, 1], [], []>} : vector<8x128xbf16>, vector<128x128xbf16>, vector<8x128xf32> -> vector<8x128xf32>
    %14 = vector.broadcast %1 : vector<1x128xf32> to vector<8x128xf32>
    %15 = arith.addf %13, %14 : vector<8x128xf32>
    %16 = arith.mulf %15, %2 : vector<8x128xf32>
    %cst_12 = arith.constant dense<0.000000e+00> : vector<8xf32>
    %17 = vector.multi_reduction <add>, %16, %cst_12 [1] : vector<8x128xf32> to vector<8xf32>
    %18 = vector.shape_cast %17 : vector<8xf32> to vector<8x1xf32>
    %c2 = arith.constant 2 : index
    %c0_13 = arith.constant 0 : index
    %c0_14 = arith.constant 0 : index
    %19 = vector.load %arg1[%c2, %c0_13, %c0_14] : memref<3x8x128xbf16, #tpu.memory_space<vmem>>, vector<1x8x128xbf16>
    %20 = vector.shape_cast %19 : vector<1x8x128xbf16> to vector<8x128xbf16>
    %cst_15 = arith.constant dense<0.000000e+00> : vector<8x128xf32>
    %21 = tpu.matmul %20, %0, %cst_15 {dimension_numbers = #tpu.dot_dimension_numbers<[1], [0], [0], [1], [0, 0, 1, 1], [], []>} : vector<8x128xbf16>, vector<128x128xbf16>, vector<8x128xf32> -> vector<8x128xf32>
    %22 = vector.broadcast %1 : vector<1x128xf32> to vector<8x128xf32>
    %23 = arith.addf %21, %22 : vector<8x128xf32>
    %24 = arith.mulf %23, %2 : vector<8x128xf32>
    %cst_16 = arith.constant dense<0.000000e+00> : vector<8xf32>
    %25 = vector.multi_reduction <add>, %24, %cst_16 [1] : vector<8x128xf32> to vector<8xf32>
    %26 = vector.shape_cast %25 : vector<8xf32> to vector<8x1xf32>
    %27 = arith.maximumf %10, %18 : vector<8x1xf32>
    %28 = arith.maximumf %27, %26 : vector<8x1xf32>
    %29 = arith.subf %10, %28 : vector<8x1xf32>
    %30 = math.exp %29 : vector<8x1xf32>
    %31 = arith.subf %18, %28 : vector<8x1xf32>
    %32 = math.exp %31 : vector<8x1xf32>
    %33 = arith.subf %26, %28 : vector<8x1xf32>
    %34 = math.exp %33 : vector<8x1xf32>
    %35 = arith.addf %30, %32 : vector<8x1xf32>
    %36 = arith.addf %35, %34 : vector<8x1xf32>
    %37 = tpu.reciprocal %36 {approx = true} : vector<8x1xf32> -> vector<8x1xf32>
    %38 = arith.mulf %30, %37 : vector<8x1xf32>
    %39 = arith.mulf %32, %37 : vector<8x1xf32>
    %40 = arith.mulf %34, %37 : vector<8x1xf32>
    %41 = tpu.concatenate %38, %39, %40 in 1 : vector<8x1xf32>, vector<8x1xf32>, vector<8x1xf32> -> vector<8x3xf32>
    %c0_17 = arith.constant 0 : index
    %c0_18 = arith.constant 0 : index
    %42 = vector.load %arg5[%c0_17, %c0_18] : memref<8x128xf32, #tpu.memory_space<vmem>>, vector<8x128xf32>
    %43 = vector.extract_strided_slice %42 {offsets = [0, 0], sizes = [8, 3], strides = [1, 1]} : vector<8x128xf32> to vector<8x3xf32>
    %44 = arith.mulf %43, %41 : vector<8x3xf32>
    %cst_19 = arith.constant dense<0.000000e+00> : vector<8xf32>
    %45 = vector.multi_reduction <add>, %44, %cst_19 [1] : vector<8x3xf32> to vector<8xf32>
    %46 = vector.shape_cast %45 : vector<8xf32> to vector<8x1xf32>
    %47 = vector.extract_strided_slice %42 {offsets = [0, 3], sizes = [8, 3], strides = [1, 1]} : vector<8x128xf32> to vector<8x3xf32>
    %48 = arith.mulf %47, %41 : vector<8x3xf32>
    %cst_20 = arith.constant dense<0.000000e+00> : vector<8xf32>
    %49 = vector.multi_reduction <add>, %48, %cst_20 [1] : vector<8x3xf32> to vector<8xf32>
    %50 = vector.shape_cast %49 : vector<8xf32> to vector<8x1xf32>
    %51 = arith.subf %46, %50 : vector<8x1xf32>
    %cst_21 = arith.constant 0.000000e+00 : f32
    %52 = vector.broadcast %cst_21 : f32 to vector<8x1xf32>
    %53 = arith.minimumf %51, %52 : vector<8x1xf32>
    %54 = math.absf %51 : vector<8x1xf32>
    %cst_22 = arith.constant 0.000000e+00 : f32
    %55 = vector.broadcast %cst_22 : f32 to vector<8x1xf32>
    %56 = arith.subf %55, %54 : vector<8x1xf32>
    %57 = math.exp %56 : vector<8x1xf32>
    %cst_23 = arith.constant 1.000000e+00 : f32
    %58 = vector.broadcast %cst_23 : f32 to vector<8x1xf32>
    %59 = arith.addf %58, %57 : vector<8x1xf32>
    %60 = math.log %59 : vector<8x1xf32>
    %61 = arith.subf %53, %60 : vector<8x1xf32>
    %cst_24 = arith.constant 0.000000e+00 : f32
    %62 = vector.broadcast %cst_24 : f32 to vector<8x1xf32>
    %63 = arith.subf %62, %61 : vector<8x1xf32>
    %cst_25 = arith.constant 0.000000e+00 : f32
    %64 = vector.broadcast %cst_25 : f32 to vector<8x1xf32>
    %65 = arith.mulf %7, %15 : vector<8x128xf32>
    %cst_26 = arith.constant dense<0.000000e+00> : vector<8xf32>
    %66 = vector.multi_reduction <add>, %65, %cst_26 [1] : vector<8x128xf32> to vector<8xf32>
    %67 = vector.shape_cast %66 : vector<8xf32> to vector<8x1xf32>
    %68 = arith.mulf %67, %67 : vector<8x1xf32>
    %69 = arith.addf %38, %39 : vector<8x1xf32>
    %70 = arith.mulf %68, %69 : vector<8x1xf32>
    %71 = arith.addf %64, %70 : vector<8x1xf32>
    %72 = arith.mulf %7, %23 : vector<8x128xf32>
    %cst_27 = arith.constant dense<0.000000e+00> : vector<8xf32>
    %73 = vector.multi_reduction <add>, %72, %cst_27 [1] : vector<8x128xf32> to vector<8xf32>
    %74 = vector.shape_cast %73 : vector<8xf32> to vector<8x1xf32>
    %75 = arith.mulf %74, %74 : vector<8x1xf32>
    %76 = arith.addf %38, %40 : vector<8x1xf32>
    %77 = arith.mulf %75, %76 : vector<8x1xf32>
    %78 = arith.addf %71, %77 : vector<8x1xf32>
    %79 = arith.mulf %15, %23 : vector<8x128xf32>
    %cst_28 = arith.constant dense<0.000000e+00> : vector<8xf32>
    %80 = vector.multi_reduction <add>, %79, %cst_28 [1] : vector<8x128xf32> to vector<8xf32>
    %81 = vector.shape_cast %80 : vector<8xf32> to vector<8x1xf32>
    %82 = arith.mulf %81, %81 : vector<8x1xf32>
    %83 = arith.addf %39, %40 : vector<8x1xf32>
    %84 = arith.mulf %82, %83 : vector<8x1xf32>
    %85 = arith.addf %78, %84 : vector<8x1xf32>
    %cst_29 = arith.constant 0.00138888892 : f32
    %86 = vector.broadcast %cst_29 : f32 to vector<8x1xf32>
    %87 = arith.mulf %86, %85 : vector<8x1xf32>
    %88 = arith.addf %63, %87 : vector<8x1xf32>
    %cst_30 = arith.constant 0.000000e+00 : f32
    %89 = vector.broadcast %cst_30 : f32 to vector<8x124xf32>
    %90 = tpu.concatenate %88, %41, %89 in 1 : vector<8x1xf32>, vector<8x3xf32>, vector<8x124xf32> -> vector<8x128xf32>
    %c0_31 = arith.constant 0 : index
    %c0_32 = arith.constant 0 : index
    %91 = vector.load %arg6[%c0_31, %c0_32] : memref<8x128xf32, #tpu.memory_space<vmem>>, vector<8x128xf32>
    tpu.vector_store %arg6[%c0_31, %c0_32], %90 {strides = array<i32>} : memref<8x128xf32, #tpu.memory_space<vmem>>, vector<8x128xf32>,
    return
  }
  func.func @transform_0(%arg0: i32) -> (i32, i32, i32) {
    %c0_i32 = arith.constant 0 : i32
    %c0_i32_0 = arith.constant 0 : i32
    %c0_i32_1 = arith.constant 0 : i32
    return %c0_i32, %arg0, %c0_i32_0 : i32, i32, i32
  }
  func.func @transform_1(%arg0: i32) -> (i32, i32) {
    %c0_i32 = arith.constant 0 : i32
    %c0_i32_0 = arith.constant 0 : i32
    %c0_i32_1 = arith.constant 0 : i32
    return %c0_i32, %c0_i32_0 : i32, i32
  }
  func.func @transform_2(%arg0: i32) -> (i32, i32) {
    %c0_i32 = arith.constant 0 : i32
    %c0_i32_0 = arith.constant 0 : i32
    %c0_i32_1 = arith.constant 0 : i32
    return %c0_i32, %c0_i32_0 : i32, i32
  }
  func.func @transform_3(%arg0: i32) -> (i32, i32) {
    %c0_i32 = arith.constant 0 : i32
    %c0_i32_0 = arith.constant 0 : i32
    return %arg0, %c0_i32 : i32, i32
  }
  func.func @transform_4(%arg0: i32) -> (i32, i32) {
    %c0_i32 = arith.constant 0 : i32
    %c0_i32_0 = arith.constant 0 : i32
    return %arg0, %c0_i32 : i32, i32
  }
  func.func @transform_5(%arg0: i32) -> (i32, i32) {
    %c0_i32 = arith.constant 0 : i32
    %c0_i32_0 = arith.constant 0 : i32
    return %arg0, %c0_i32 : i32, i32
  }
}

</mosaic_0001>

<llo_original>
// kernel: tpu_custom_call.1
$region0: #{tpu_custom_call.1}
  #allocation0 [shape = 'u32[]', space=smem, size = 0x4, offset = 0x4, fixed_abs, tag = 'smem constant byte address 0x4 - core index']
  #allocation1 [shape = 'u32[144,128]{1,0:T(1,128)}', space=vmem, size = 0x12000, scoped, tag = 'internal scratch']
  %s0 = inlined_call_operand.hbm [shape: bf16[3,16,128], index: 0, kind: input, shape index: {}]
  %s1 = inlined_call_operand.hbm [shape: bf16[128,128], index: 1, kind: input, shape index: {}]
  %s2 = inlined_call_operand.vmem [shape: f32[1,128], index: 2, kind: input, shape index: {}]
  %s3 = inlined_call_operand.hbm [shape: f32[16,128], index: 3, kind: input, shape index: {}]
  %s4 = inlined_call_operand.hbm [shape: f32[16,128], index: 4, kind: input, shape index: {}]
  %s5 = inlined_call_operand.hbm [shape: f32[16,128], index: 5, kind: output, shape index: {}]
  %s6 = sld [smem:[#allocation0]]
  $region69: #{tpu_custom_call.1} parent=0
    _
  %s8 = ssub.s32 1, %s6
  %s9 = scalar_select 0, %s8, %s6
  $region1: #{tpu_custom_call.1} parent=0
    #allocation2 [shape = 'u8[12288]{0}', space=vmem, size = 0x3000, scoped, tag = 'input window, operand 0']
    #allocation3 [shape = 's32[2]{0}', space=sflag, size = 0x8, scoped, tag = 'scoped memory for tpu_custom_call.1']
    #allocation4 [shape = 's32[2]{0}', space=sflag, size = 0x8, scoped, tag = 'scoped memory for tpu_custom_call.1']
    #allocation5 [shape = 'u8[32768]{0}', space=vmem, size = 0x8000, scoped, tag = 'input window, operand 1, single buffered']
    #allocation6 [shape = 's32[1]{0}', space=sflag, size = 0x4, scoped, tag = 'scoped memory for tpu_custom_call.1']
    #allocation7 [shape = 'u8[8192]{0}', space=vmem, size = 0x2000, scoped, tag = 'input window, operand 3']
    #allocation8 [shape = 'u8[8192]{0}', space=vmem, size = 0x2000, scoped, tag = 'input window, operand 4']
    #allocation9 [shape = 'u8[8192]{0}', space=vmem, size = 0x2000, scoped, tag = 'output window, operand 0']
    %10 = vsyncpa [#allocation3], 0
    %s11 = scalar_lea.sflag [#allocation3], 1
    %12 = vsyncpa %s11, 0
    %13 = vsyncpa [#allocation6], 0
    %14 = vsyncpa [#allocation4], 0
    %s15 = scalar_lea.sflag [#allocation4], 1
    %16 = vsyncpa %s15, 0
    loop: start=0, step=1, limit=4
    $region2: #{tpu_custom_call.1} parent=1 // loop_pre_header
      _
    $region3: #{tpu_custom_call.1} parent=1 // loop_header
      %s18 = sphi 0, %s22
      %p19 = scmp.ge.s32.totalorder %s18, 4
      %s28 = sphi 0, %s30
      %s31 = sphi 0, %s28
      %s32 = sphi 0, %s31
      %s48 = sphi 0, %s32
      %s52 = sphi 0, %s52
      %s54 = sphi 0, %s52
      %s55 = sphi 0, %s54
      %s69 = sphi 0, %s55
      %s73 = sphi 0, %s73
      %s75 = sphi 0, %s73
      %s76 = sphi 0, %s75
      %s90 = sphi 0, %s76
      %s96 = sphi 0, %s98
      %s99 = sphi 0, %s96
      %s100 = sphi 0, %s99
      %s116 = sphi 0, %s100
      %s122 = sphi 0, %s124
      %s125 = sphi 0, %s122
      %s126 = sphi 0, %s125
      %s142 = sphi 0, %s126
      %s148 = sphi 0, %s150
      %s151 = sphi 0, %s148
      %s152 = sphi 0, %s151
      %s168 = sphi 0, %s152
    $region4: #{tpu_custom_call.1} parent=1 // loop_header_branch
      %21 = sbr.rel (%p19) target = $region8
    $region5: #{tpu_custom_call.1} parent=1 // loop_body
      %s23 = ssub.s32 %s18, 1
      %s24 = ssub.s32 %s18, 2
      %s25 = sadd.s32 %s18, 1
      %s26 = ssub.s32 %s18, %s25
      %p27 = scmp.eq.s32.totalorder %s26, 0
      %s29 = sadd.s32 %s28, 1
      %s30 = scalar_select %p27, %s28, %s29
      %p33 = pneg %p27
      %p34 = scmp.eq.s32.totalorder %s18, 1
      %p35 = por %p33, %p34
      %p36 = scmp.ne.s32.totalorder %s28, %s31
      %p37 = scmp.eq.s32.totalorder %s18, 0
      %p38 = por %p36, %p37
      %p39 = scmp.ne.s32.totalorder %s28, %s31
      %p40 = scmp.eq.s32.totalorder %s23, 1
      %p41 = por %p39, %p40
      %p42 = scmp.ne.s32.totalorder %s31, %s32
      %p43 = scmp.eq.s32.totalorder %s23, 0
      %p44 = por %p42, %p43
      %p45 = scmp.ne.s32.totalorder %s31, %s32
      %p46 = scmp.eq.s32.totalorder %s24, 1
      %p47 = por %p45, %p46
      %p49 = scmp.ne.s32.totalorder %s32, %s48
      %p50 = scmp.eq.s32.totalorder %s24, 0
      %p51 = por %p49, %p50
      %s53 = sadd.s32 %s52, 1
      %p56 = scmp.eq.s32.totalorder %s18, 1
      %p57 = scmp.ne.s32.totalorder %s52, %s54
      %p58 = scmp.eq.s32.totalorder %s18, 0
      %p59 = por %p57, %p58
      %p60 = scmp.ne.s32.totalorder %s52, %s54
      %p61 = scmp.eq.s32.totalorder %s23, 1
      %p62 = por %p60, %p61
      %p63 = scmp.ne.s32.totalorder %s54, %s55
      %p64 = scmp.eq.s32.totalorder %s23, 0
      %p65 = por %p63, %p64
      %p66 = scmp.ne.s32.totalorder %s54, %s55
      %p67 = scmp.eq.s32.totalorder %s24, 1
      %p68 = por %p66, %p67
      %p70 = scmp.ne.s32.totalorder %s55, %s69
      %p71 = scmp.eq.s32.totalorder %s24, 0
      %p72 = por %p70, %p71
      %s74 = sadd.s32 %s73, 1
      %p77 = scmp.eq.s32.totalorder %s18, 1
      %p78 = scmp.ne.s32.totalorder %s73, %s75
      %p79 = scmp.eq.s32.totalorder %s18, 0
      %p80 = por %p78, %p79
      %p81 = scmp.ne.s32.totalorder %s73, %s75
      %p82 = scmp.eq.s32.totalorder %s23, 1
      %p83 = por %p81, %p82
      %p84 = scmp.ne.s32.totalorder %s75, %s76
      %p85 = scmp.eq.s32.totalorder %s23, 0
      %p86 = por %p84, %p85
      %p87 = scmp.ne.s32.totalorder %s75, %s76
      %p88 = scmp.eq.s32.totalorder %s24, 1
      %p89 = por %p87, %p88
      %p91 = scmp.ne.s32.totalorder %s76, %s90
      %p92 = scmp.eq.s32.totalorder %s24, 0
      %p93 = por %p91, %p92
      %s94 = ssub.s32 %s18, %s25
      %p95 = scmp.eq.s32.totalorder %s94, 0
      %s97 = sadd.s32 %s96, 1
      %s98 = scalar_select %p95, %s96, %s97
      %p101 = pneg %p95
      %p102 = scmp.eq.s32.totalorder %s18, 1
      %p103 = por %p101, %p102
      %p104 = scmp.ne.s32.totalorder %s96, %s99
      %p105 = scmp.eq.s32.totalorder %s18, 0
      %p106 = por %p104, %p105
      %p107 = scmp.ne.s32.totalorder %s96, %s99
      %p108 = scmp.eq.s32.totalorder %s23, 1
      %p109 = por %p107, %p108
      %p110 = scmp.ne.s32.totalorder %s99, %s100
      %p111 = scmp.eq.s32.totalorder %s23, 0
      %p112 = por %p110, %p111
      %p113 = scmp.ne.s32.totalorder %s99, %s100
      %p114 = scmp.eq.s32.totalorder %s24, 1
      %p115 = por %p113, %p114
      %p117 = scmp.ne.s32.totalorder %s100, %s116
      %p118 = scmp.eq.s32.totalorder %s24, 0
      %p119 = por %p117, %p118
      %s120 = ssub.s32 %s18, %s25
      %p121 = scmp.eq.s32.totalorder %s120, 0
      %s123 = sadd.s32 %s122, 1
      %s124 = scalar_select %p121, %s122, %s123
      %p127 = pneg %p121
      %p128 = scmp.eq.s32.totalorder %s18, 1
      %p129 = por %p127, %p128
      %p130 = scmp.ne.s32.totalorder %s122, %s125
      %p131 = scmp.eq.s32.totalorder %s18, 0
      %p132 = por %p130, %p131
      %p133 = scmp.ne.s32.totalorder %s122, %s125
      %p134 = scmp.eq.s32.totalorder %s23, 1
      %p135 = por %p133, %p134
      %p136 = scmp.ne.s32.totalorder %s125, %s126
      %p137 = scmp.eq.s32.totalorder %s23, 0
      %p138 = por %p136, %p137
      %p139 = scmp.ne.s32.totalorder %s125, %s126
      %p140 = scmp.eq.s32.totalorder %s24, 1
      %p141 = por %p139, %p140
      %p143 = scmp.ne.s32.totalorder %s126, %s142
      %p144 = scmp.eq.s32.totalorder %s24, 0
      %p145 = por %p143, %p144
      %s146 = ssub.s32 %s18, %s25
      %p147 = scmp.eq.s32.totalorder %s146, 0
      %s149 = sadd.s32 %s148, 1
      %s150 = scalar_select %p147, %s148, %s149
      %p153 = pneg %p147
      %p154 = scmp.eq.s32.totalorder %s18, 1
      %p155 = por %p153, %p154
      %p156 = scmp.ne.s32.totalorder %s148, %s151
      %p157 = scmp.eq.s32.totalorder %s18, 0
      %p158 = por %p156, %p157
      %p159 = scmp.ne.s32.totalorder %s148, %s151
      %p160 = scmp.eq.s32.totalorder %s23, 1
      %p161 = por %p159, %p160
      %p162 = scmp.ne.s32.totalorder %s151, %s152
      %p163 = scmp.eq.s32.totalorder %s23, 0
      %p164 = por %p162, %p163
      %p165 = scmp.ne.s32.totalorder %s151, %s152
      %p166 = scmp.eq.s32.totalorder %s24, 1
      %p167 = por %p165, %p166
      %p169 = scmp.ne.s32.totalorder %s152, %s168
      %p170 = scmp.eq.s32.totalorder %s24, 0
      %p171 = por %p169, %p170
      %p172 = scmp.le.s32.totalorder 1, %s18
      %p173 = scmp.lt.s32.totalorder %s18, 3
      %p174 = pnand %p172, %p173
      %p175 = pneg %p174
      // Predicated region
      $region9: #{tpu_custom_call.1} parent=5 // pred_check
        _
      $region10: #{tpu_custom_call.1} parent=5 // pred_check_branch
        %177 = sbr.rel (%p174) target = $region12
      $region11: #{tpu_custom_call.1} parent=5 // pred_region
        %s178 = ssub.s32 %s18, 1
        // Predicated region
        $region13: #{tpu_custom_call.1} parent=11 // pred_check
          %p179 = pneg %p65
        $region14: #{tpu_custom_call.1} parent=11 // pred_check_branch
          %181 = sbr.rel (%p179) target = $region16
        $region15: #{tpu_custom_call.1} parent=11 // pred_region
          %s183 = ssub.s32 1024, 1024
          %184 = vsyncadd [#allocation6], %s183
          %s185 = sshll.u32 [#allocation5], 4
          %s186 = int_to_ptr.vmem [resolvable:$true] %s185
          %191 = dma.hbm_to_vmem [thread:$0]  %s1, 1024, %s186, [#allocation6], 64, 64, 4
        $region16: #{tpu_custom_call.1} parent=11 // pred_fallthru
          _
        // Predicated region
        $region17: #{tpu_custom_call.1} parent=11 // pred_check
          %p192 = pneg %p86
        $region18: #{tpu_custom_call.1} parent=11 // pred_check_branch
          %194 = sbr.rel (%p192) target = $region20
        $region19: #{tpu_custom_call.1} parent=11 // pred_region
          _
        $region20: #{tpu_custom_call.1} parent=11 // pred_fallthru
          _
      $region12: #{tpu_custom_call.1} parent=5 // pred_fallthru
        _
      %p195 = scmp.lt.s32.totalorder %s18, 2
      // Predicated region
      $region21: #{tpu_custom_call.1} parent=5 // pred_check
        %p196 = pneg %p195
      $region22: #{tpu_custom_call.1} parent=5 // pred_check_branch
        %198 = sbr.rel (%p196) target = $region24
      $region23: #{tpu_custom_call.1} parent=5 // pred_region
        // Predicated region
        $region25: #{tpu_custom_call.1} parent=23 // pred_check
          %p199 = pneg %p38
        $region26: #{tpu_custom_call.1} parent=23 // pred_check_branch
          %201 = sbr.rel (%p199) target = $region28
        $region27: #{tpu_custom_call.1} parent=23 // pred_region
          %s202 = sand.u32 %s18, 1
          %s203 = scalar_lea.sflag [#allocation3], %s202
          %s204 = sand.u32 %s28, 1
          %s205 = smul.addr %s204, 12
          %s206 = scalar_lea.vmem [#allocation2], %s205
          %s208 = ssub.s32 192, 192
          %209 = vsyncadd %s203, %s208
          %s210 = smul.addr %s18, 64
          %s211 = scalar_lea.hbm %s0, %s210
          %s212 = sshll.u32 %s206, 4
          %s213 = int_to_ptr.vmem [resolvable:$true] %s212
          %218 = dma.hbm_to_vmem [thread:$0]  %s211, 192, %s213, %s203, 128, 64, 4
        $region28: #{tpu_custom_call.1} parent=23 // pred_fallthru
          _
        // Predicated region
        $region29: #{tpu_custom_call.1} parent=23 // pred_check
          %p219 = pneg %p106
        $region30: #{tpu_custom_call.1} parent=23 // pred_check_branch
          %221 = sbr.rel (%p219) target = $region32
        $region31: #{tpu_custom_call.1} parent=23 // pred_region
          %s222 = sand.u32 %s18, 1
          %s223 = scalar_lea.sflag [#allocation3], %s222
          %s224 = sand.u32 %s96, 1
          %s225 = smul.addr %s224, 8
          %s226 = scalar_lea.vmem [#allocation7], %s225
          %s228 = ssub.s32 128, 128
          %229 = vsyncadd %s223, %s228
          %s230 = smul.addr %s18, 128
          %s231 = scalar_lea.hbm %s3, %s230
          %s233 = sshll.u32 %s226, 4
          %s234 = int_to_ptr.vmem [resolvable:$true] %s233
          %236 = dma.hbm_to_vmem [thread:$0]  %s231, 128, %s234, %s223
        $region32: #{tpu_custom_call.1} parent=23 // pred_fallthru
          _
        // Predicated region
        $region33: #{tpu_custom_call.1} parent=23 // pred_check
          %p237 = pneg %p132
        $region34: #{tpu_custom_call.1} parent=23 // pred_check_branch
          %239 = sbr.rel (%p237) target = $region36
        $region35: #{tpu_custom_call.1} parent=23 // pred_region
          %s240 = sand.u32 %s18, 1
          %s241 = scalar_lea.sflag [#allocation3], %s240
          %s242 = sand.u32 %s122, 1
          %s243 = smul.addr %s242, 8
          %s244 = scalar_lea.vmem [#allocation8], %s243
          %s246 = ssub.s32 128, 128
          %247 = vsyncadd %s241, %s246
          %s248 = smul.addr %s18, 128
          %s249 = scalar_lea.hbm %s4, %s248
          %s251 = sshll.u32 %s244, 4
          %s252 = int_to_ptr.vmem [resolvable:$true] %s251
          %254 = dma.hbm_to_vmem [thread:$0]  %s249, 128, %s252, %s241
        $region36: #{tpu_custom_call.1} parent=23 // pred_fallthru
          _
      $region24: #{tpu_custom_call.1} parent=5 // pred_fallthru
        _
      %p255 = scmp.le.s32.totalorder 1, %s18
      %p256 = scmp.lt.s32.totalorder %s18, 3
      %p257 = pnand %p255, %p256
      %p258 = pneg %p257
      // Predicated region
      $region37: #{tpu_custom_call.1} parent=5 // pred_check
        _
      $region38: #{tpu_custom_call.1} parent=5 // pred_check_branch
        %260 = sbr.rel (%p257) target = $region40
      $region39: #{tpu_custom_call.1} parent=5 // pred_region
        %s261 = ssub.s32 %s18, 1
        %s262 = sand.u32 %s23, 1
        %s263 = scalar_lea.sflag [#allocation3], %s262
        %s264 = sand.u32 %s31, 1
        %s265 = smul.addr %s264, 12
        %s266 = scalar_lea.vmem [#allocation2], %s265
        // Predicated region
        $region41: #{tpu_custom_call.1} parent=39 // pred_check
          %p267 = pneg %p44
        $region42: #{tpu_custom_call.1} parent=39 // pred_check_branch
          %269 = sbr.rel (%p267) target = $region44
        $region43: #{tpu_custom_call.1} parent=39 // pred_region
          %270 = dma.done %s263, 192
        $region44: #{tpu_custom_call.1} parent=39 // pred_fallthru
          _
        // Predicated region
        $region45: #{tpu_custom_call.1} parent=39 // pred_check
          %p271 = pneg %p65
        $region46: #{tpu_custom_call.1} parent=39 // pred_check_branch
          %273 = sbr.rel (%p271) target = $region48
        $region47: #{tpu_custom_call.1} parent=39 // pred_region
          %274 = dma.done [#allocation6], 1024
        $region48: #{tpu_custom_call.1} parent=39 // pred_fallthru
          _
        %s275 = sand.u32 %s23, 1
        %s276 = scalar_lea.sflag [#allocation3], %s275
        %s277 = sand.u32 %s99, 1
        %s278 = smul.addr %s277, 8
        %s279 = scalar_lea.vmem [#allocation7], %s278
        // Predicated region
        $region49: #{tpu_custom_call.1} parent=39 // pred_check
          %p280 = pneg %p112
        $region50: #{tpu_custom_call.1} parent=39 // pred_check_branch
          %282 = sbr.rel (%p280) target = $region52
        $region51: #{tpu_custom_call.1} parent=39 // pred_region
          %283 = dma.done %s276, 128
        $region52: #{tpu_custom_call.1} parent=39 // pred_fallthru
          _
        %s284 = sand.u32 %s23, 1
        %s285 = scalar_lea.sflag [#allocation3], %s284
        %s286 = sand.u32 %s125, 1
        %s287 = smul.addr %s286, 8
        %s288 = scalar_lea.vmem [#allocation8], %s287
        // Predicated region
        $region53: #{tpu_custom_call.1} parent=39 // pred_check
          %p289 = pneg %p138
        $region54: #{tpu_custom_call.1} parent=39 // pred_check_branch
          %291 = sbr.rel (%p289) target = $region56
        $region55: #{tpu_custom_call.1} parent=39 // pred_region
          %292 = dma.done %s285, 128
        $region56: #{tpu_custom_call.1} parent=39 // pred_fallthru
          _
        %s293 = sand.u32 %s23, 1
        %s294 = scalar_lea.sflag [#allocation3], %s293
        %s295 = sand.u32 %s31, 1
        %s296 = smul.addr %s295, 12
        %s297 = scalar_lea.vmem [#allocation2], %s296
        %p298 = pneg %p44
        %p299 = pneg %p41
        %p300 = pneg %p65
        %p301 = pneg %p62
        %p302 = pneg %p86
        %p303 = pneg %p83
        %s304 = sand.u32 %s23, 1
        %s305 = scalar_lea.sflag [#allocation3], %s304
        %s306 = sand.u32 %s99, 1
        %s307 = smul.addr %s306, 8
        %s308 = scalar_lea.vmem [#allocation7], %s307
        %p309 = pneg %p112
        %p310 = pneg %p109
        %s311 = sand.u32 %s23, 1
        %s312 = scalar_lea.sflag [#allocation3], %s311
        %s313 = sand.u32 %s125, 1
        %s314 = smul.addr %s313, 8
        %s315 = scalar_lea.vmem [#allocation8], %s314
        %p316 = pneg %p138
        %p317 = pneg %p135
        %p318 = pneg %p164
        %p319 = pneg %p161
        %s320 = sand.u32 %s151, 1
        %s321 = scalar_lea.sflag [#allocation4], %s320
        %s322 = sand.u32 %s151, 1
        %s323 = smul.addr %s322, 8
        %s324 = scalar_lea.vmem [#allocation9], %s323
        %v326 = vld [vmem:[#allocation5] sm:$0xf]
        %v327 = vld [vmem:[#allocation5 + $0x4] sm:$0xf]
        %v328 = vld [vmem:[#allocation5 + $0x8] sm:$0xf]
        %v329 = vld [vmem:[#allocation5 + $0xc] sm:$0xf]
        %v330 = vld [vmem:[#allocation5 + $0x10] sm:$0xf]
        %v331 = vld [vmem:[#allocation5 + $0x14] sm:$0xf]
        %v332 = vld [vmem:[#allocation5 + $0x18] sm:$0xf]
        %v333 = vld [vmem:[#allocation5 + $0x1c] sm:$0xf]
        %v334 = vld [vmem:[#allocation5 + $0x20] sm:$0xf]
        %v335 = vld [vmem:[#allocation5 + $0x24] sm:$0xf]
        %v336 = vld [vmem:[#allocation5 + $0x28] sm:$0xf]
        %v337 = vld [vmem:[#allocation5 + $0x2c] sm:$0xf]
        %v338 = vld [vmem:[#allocation5 + $0x30] sm:$0xf]
        %v339 = vld [vmem:[#allocation5 + $0x34] sm:$0xf]
        %v340 = vld [vmem:[#allocation5 + $0x38] sm:$0xf]
        %v341 = vld [vmem:[#allocation5 + $0x3c] sm:$0xf]
        %v342 = vld [vmem:[%s2] sm:$0x1]
        %v343 = vld [vmem:[%s279] sm:$0xff]
        %v344 = vld [vmem:[%s266] sm:$0xf]
        %v346 = vlaneseq
        %v347 = vshrl.u32 %v346, 7
        %v348 = vsub.s32 0, %v347
        %v349 = vrot.slane %v342, %v348
        %v367 = vunpack.c.l.b16 %v326
        %v368 = vunpack.c.l.b16 %v327
        %v369 = vunpack.c.l.b16 %v328
        %v370 = vunpack.c.l.b16 %v329
        %v371 = vunpack.c.l.b16 %v330
        %v372 = vunpack.c.l.b16 %v331
        %v373 = vunpack.c.l.b16 %v332
        %v374 = vunpack.c.l.b16 %v333
        %v375 = vunpack.c.l.b16 %v334
        %v376 = vunpack.c.l.b16 %v335
        %v377 = vunpack.c.l.b16 %v336
        %v378 = vunpack.c.l.b16 %v337
        %v379 = vunpack.c.l.b16 %v338
        %v380 = vunpack.c.l.b16 %v339
        %v381 = vunpack.c.l.b16 %v340
        %v382 = vunpack.c.l.b16 %v341
        %v383 = vpack.c.b16 %v368, %v367
        %v384 = vpack.c.b16 %v370, %v369
        %v385 = vpack.c.b16 %v372, %v371
        %v386 = vpack.c.b16 %v374, %v373
        %v387 = vpack.c.b16 %v376, %v375
        %v388 = vpack.c.b16 %v378, %v377
        %v389 = vpack.c.b16 %v380, %v379
        %v390 = vpack.c.b16 %v382, %v381
        %399 = vmatprep.subr.bf16.mxu0 0
        %400 = vmatpush1.bf16.msra.mxu0 %v383
        %401 = vmatprep.subr.bf16.mxu0 0
        %402 = vmatpush1.bf16.msra.mxu0 %v384
        %403 = vmatprep.subr.bf16.mxu0 0
        %404 = vmatpush1.bf16.msra.mxu0 %v385
        %405 = vmatprep.subr.bf16.mxu0 0
        %406 = vmatpush1.bf16.msra.mxu0 %v386
        %407 = vmatprep.subr.bf16.mxu0 0
        %408 = vmatpush1.bf16.msra.mxu0 %v387
        %409 = vmatprep.subr.bf16.mxu0 0
        %410 = vmatpush1.bf16.msra.mxu0 %v388
        %411 = vmatprep.subr.bf16.mxu0 0
        %412 = vmatpush1.bf16.msra.mxu0 %v389
        %413 = vmatprep.subr.bf16.mxu0 0
        %414 = vmatpush1.bf16.msra.mxu0 %v390
        %415 = vmatprep.subr.bf16.mxu0 0
        %416 = vmatpush1.bf16.msra.mxu0 0
        %417 = vmatprep.subr.bf16.mxu0 0
        %418 = vmatpush1.bf16.msra.mxu0 0
        %419 = vmatprep.subr.bf16.mxu0 0
        %420 = vmatpush1.bf16.msra.mxu0 0
        %421 = vmatprep.subr.bf16.mxu0 0
        %422 = vmatpush1.bf16.msra.mxu0 0
        %423 = vmatprep.subr.bf16.mxu0 0
        %424 = vmatpush1.bf16.msra.mxu0 0
        %425 = vmatprep.subr.bf16.mxu0 0
        %426 = vmatpush1.bf16.msra.mxu0 0
        %427 = vmatprep.subr.bf16.mxu0 0
        %428 = vmatpush1.bf16.msra.mxu0 0
        %429 = vmatprep.subr.bf16.mxu0 0
        %430 = vmatpush1.bf16.msra.mxu0 0
        %431 = vmatprep.mubr.bf16.mxu0 0
        %432 = vmatmul.mubr.bf16.gmra.mrb[0].mxu0 %v344
        %v433 = vpop.f32.mrb[0].mxu0
        %v434 = vadd.f32 %v349, %v433
        %v435 = vpop.f32.mrb[0].mxu0
        %v436 = vpop.f32.mrb[0].mxu0
        %v437 = vpop.f32.mrb[0].mxu0
        %438 = vdwg.mxu0
        %v439 = vmul.f32 %v434, %v343
        %440 = vadd.xlane.f32.xlu0 %v439
        %v441 = vpop.xlane.xlu0 %440
        %s442 = scalar_lea.vmem %s266, 4 [#allocation2]
        %v443 = vld [vmem:[%s442] sm:$0xf]
        %444 = vmatprep.subr.bf16.mxu0 0
        %445 = vmatpush1.bf16.msra.mxu0 %v383
        %446 = vmatprep.subr.bf16.mxu0 0
        %447 = vmatpush1.bf16.msra.mxu0 %v384
        %448 = vmatprep.subr.bf16.mxu0 0
        %449 = vmatpush1.bf16.msra.mxu0 %v385
        %450 = vmatprep.subr.bf16.mxu0 0
        %451 = vmatpush1.bf16.msra.mxu0 %v386
        %452 = vmatprep.subr.bf16.mxu0 0
        %453 = vmatpush1.bf16.msra.mxu0 %v387
        %454 = vmatprep.subr.bf16.mxu0 0
        %455 = vmatpush1.bf16.msra.mxu0 %v388
        %456 = vmatprep.subr.bf16.mxu0 0
        %457 = vmatpush1.bf16.msra.mxu0 %v389
        %458 = vmatprep.subr.bf16.mxu0 0
        %459 = vmatpush1.bf16.msra.mxu0 %v390
        %460 = vmatprep.subr.bf16.mxu0 0
        %461 = vmatpush1.bf16.msra.mxu0 0
        %462 = vmatprep.subr.bf16.mxu0 0
        %463 = vmatpush1.bf16.msra.mxu0 0
        %464 = vmatprep.subr.bf16.mxu0 0
        %465 = vmatpush1.bf16.msra.mxu0 0
        %466 = vmatprep.subr.bf16.mxu0 0
        %467 = vmatpush1.bf16.msra.mxu0 0
        %468 = vmatprep.subr.bf16.mxu0 0
        %469 = vmatpush1.bf16.msra.mxu0 0
        %470 = vmatprep.subr.bf16.mxu0 0
        %471 = vmatpush1.bf16.msra.mxu0 0
        %472 = vmatprep.subr.bf16.mxu0 0
        %473 = vmatpush1.bf16.msra.mxu0 0
        %474 = vmatprep.subr.bf16.mxu0 0
        %475 = vmatpush1.bf16.msra.mxu0 0
        %476 = vmatprep.mubr.bf16.mxu0 0
        %477 = vmatmul.mubr.bf16.gmra.mrb[0].mxu0 %v443
        %v478 = vpop.f32.mrb[0].mxu0
        %v479 = vadd.f32 %v349, %v478
        %v480 = vpop.f32.mrb[0].mxu0
        %v481 = vpop.f32.mrb[0].mxu0
        %v482 = vpop.f32.mrb[0].mxu0
        %483 = vdwg.mxu0
        %v484 = vmul.f32 %v479, %v343
        %485 = vadd.xlane.f32.xlu0 %v484
        %v486 = vpop.xlane.xlu0 %485
        %s487 = scalar_lea.vmem %s266, 8 [#allocation2]
        %v488 = vld [vmem:[%s487] sm:$0xf]
        %489 = vmatprep.subr.bf16.mxu0 0
        %490 = vmatpush1.bf16.msra.mxu0 %v383
        %491 = vmatprep.subr.bf16.mxu0 0
        %492 = vmatpush1.bf16.msra.mxu0 %v384
        %493 = vmatprep.subr.bf16.mxu0 0
        %494 = vmatpush1.bf16.msra.mxu0 %v385
        %495 = vmatprep.subr.bf16.mxu0 0
        %496 = vmatpush1.bf16.msra.mxu0 %v386
        %497 = vmatprep.subr.bf16.mxu0 0
        %498 = vmatpush1.bf16.msra.mxu0 %v387
        %499 = vmatprep.subr.bf16.mxu0 0
        %500 = vmatpush1.bf16.msra.mxu0 %v388
        %501 = vmatprep.subr.bf16.mxu0 0
        %502 = vmatpush1.bf16.msra.mxu0 %v389
        %503 = vmatprep.subr.bf16.mxu0 0
        %504 = vmatpush1.bf16.msra.mxu0 %v390
        %505 = vmatprep.subr.bf16.mxu0 0
        %506 = vmatpush1.bf16.msra.mxu0 0
        %507 = vmatprep.subr.bf16.mxu0 0
        %508 = vmatpush1.bf16.msra.mxu0 0
        %509 = vmatprep.subr.bf16.mxu0 0
        %510 = vmatpush1.bf16.msra.mxu0 0
        %511 = vmatprep.subr.bf16.mxu0 0
        %512 = vmatpush1.bf16.msra.mxu0 0
        %513 = vmatprep.subr.bf16.mxu0 0
        %514 = vmatpush1.bf16.msra.mxu0 0
        %515 = vmatprep.subr.bf16.mxu0 0
        %516 = vmatpush1.bf16.msra.mxu0 0
        %517 = vmatprep.subr.bf16.mxu0 0
        %518 = vmatpush1.bf16.msra.mxu0 0
        %519 = vmatprep.subr.bf16.mxu0 0
        %520 = vmatpush1.bf16.msra.mxu0 0
        %521 = vmatprep.mubr.bf16.mxu0 0
        %522 = vmatmul.mubr.bf16.gmra.mrb[0].mxu0 %v488
        %v523 = vpop.f32.mrb[0].mxu0
        %v524 = vadd.f32 %v349, %v523
        %v525 = vpop.f32.mrb[0].mxu0
        %v526 = vpop.f32.mrb[0].mxu0
        %v527 = vpop.f32.mrb[0].mxu0
        %528 = vdwg.mxu0
        %v529 = vmul.f32 %v524, %v343
        %530 = vadd.xlane.f32.xlu0 %v529
        %v531 = vpop.xlane.xlu0 %530
        %v532 = vmax.f32 %v441, %v486
        %v533 = vmax.f32 %v532, %v531
        %v534 = vsub.f32 %v441, %v533
        %v535 = vmul.f32 %v534, 1.442695
        %v536 = vpow.pop %v535
        %v537 = vsub.f32 %v486, %v533
        %v538 = vmul.f32 %v537, 1.442695
        %v539 = vpow.pop %v538
        %v540 = vsub.f32 %v531, %v533
        %v541 = vmul.f32 %v540, 1.442695
        %v542 = vpow.pop %v541
        %v543 = vadd.f32 %v536, %v539
        %v544 = vadd.f32 %v543, %v542
        %v545 = vrcp.pop %v544
        %v546 = vmul.f32 %v536, %v545
        %v547 = vmul.f32 %v539, %v545
        %v548 = vmul.f32 %v542, %v545
        %vm549 = vcmask 7168
        %v550 = vsel %vm549, %v546, %v547
        %vm551 = vcmask 15360
        %v552 = vsel %vm551, %v550, %v548
        %v553 = vld [vmem:[%s288] sm:$0xff]
        %v554 = vmul.f32 %v553, %v552
        %vm555 = vcmask 23552
        %v556 = vsel %vm555, %v554, 0.0
        %557 = vadd.xlane.f32.xlu0 %v556
        %v558 = vpop.xlane.xlu0 %557
        %560 = vrot.lane.b32.xlu0 %v552, 3
        %v561 = vpop.permute.xlu0 %560
        %v563 = vmul.f32 %v553, %v561
        %565 = vrot.lane.b32.xlu0 %v563, 125
        %v566 = vpop.permute.xlu0 %565
        %v568 = vsel %vm555, %v566, 0.0
        %569 = vadd.xlane.f32.xlu0 %v568
        %v570 = vpop.xlane.xlu0 %569
        %v571 = vsub.f32 %v558, %v570
        %v572 = vmin.f32 %v571, 0.0
        %v573 = vand.u32 2147483647, %v571
        %v574 = vsub.f32 0.0, %v573
        %v575 = vmul.f32 %v574, 1.442695
        %v576 = vpow.pop %v575
        %v577 = vadd.f32 %v576, 1.0
        %v578 = vlog2.pop %v577
        %v579 = vmul.f32 %v578, 0.6931472
        %v580 = vsub.f32 %v572, %v579
        %v581 = vsub.f32 0.0, %v580
        %v582 = vmul.f32 %v434, %v479
        %583 = vadd.xlane.f32.xlu0 %v582
        %v584 = vpop.xlane.xlu0 %583
        %v585 = vmul.f32 %v584, %v584
        %v586 = vadd.f32 %v546, %v547
        %v587 = vmul.f32 %v585, %v586
        %v588 = vadd.f32 %v587, 0.0
        %v589 = vmul.f32 %v434, %v524
        %590 = vadd.xlane.f32.xlu0 %v589
        %v591 = vpop.xlane.xlu0 %590
        %v592 = vmul.f32 %v591, %v591
        %v593 = vadd.f32 %v546, %v548
        %v594 = vmul.f32 %v592, %v593
        %v595 = vadd.f32 %v588, %v594
        %v596 = vmul.f32 %v479, %v524
        %597 = vadd.xlane.f32.xlu0 %v596
        %v598 = vpop.xlane.xlu0 %597
        %v599 = vmul.f32 %v598, %v598
        %v600 = vadd.f32 %v547, %v548
        %v601 = vmul.f32 %v599, %v600
        %v602 = vadd.f32 %v595, %v601
        %v603 = vmul.f32 %v602, 0.0013888889
        %v604 = vadd.f32 %v581, %v603
        %605 = vrot.lane.b32.xlu0 %v552, 1
        %v606 = vpop.permute.xlu0 %605
        %v608 = vsel %vm549, %v604, %v606
        %vm609 = vcmask 31744
        %v610 = vsel %vm609, %v608, 0.0
        %611 = vst [vmem:[%s324] sm:$0xff] %v610
        %s612 = sand.u32 %s151, 1
        %s613 = scalar_lea.sflag [#allocation4], %s612
        %s614 = sand.u32 %s151, 1
        %s615 = smul.addr %s614, 8
        %s616 = scalar_lea.vmem [#allocation9], %s615
        // Predicated region
        $region57: #{tpu_custom_call.1} parent=39 // pred_check
          %p617 = pneg %p161
        $region58: #{tpu_custom_call.1} parent=39 // pred_check_branch
          %619 = sbr.rel (%p617) target = $region60
        $region59: #{tpu_custom_call.1} parent=39 // pred_region
          %s621 = ssub.s32 128, 128
          %622 = vsyncadd %s613, %s621
          %s623 = smul.addr %s23, 128
          %s624 = scalar_lea.hbm %s5, %s623
          %s626 = sshll.u32 %s616, 4
          %s627 = int_to_ptr.vmem [resolvable:$true] %s626
          %629 = dma.vmem_to_hbm [thread:$0]  %s627, 128, %s624, %s613
        $region60: #{tpu_custom_call.1} parent=39 // pred_fallthru
          _
      $region40: #{tpu_custom_call.1} parent=5 // pred_fallthru
        _
      %p630 = scmp.le.s32.totalorder 2, %s18
      // Predicated region
      $region61: #{tpu_custom_call.1} parent=5 // pred_check
        %p631 = pneg %p630
      $region62: #{tpu_custom_call.1} parent=5 // pred_check_branch
        %633 = sbr.rel (%p631) target = $region64
      $region63: #{tpu_custom_call.1} parent=5 // pred_region
        %s634 = ssub.s32 %s18, 2
        // Predicated region
        $region65: #{tpu_custom_call.1} parent=63 // pred_check
          %p635 = pneg %p167
        $region66: #{tpu_custom_call.1} parent=63 // pred_check_branch
          %637 = sbr.rel (%p635) target = $region68
        $region67: #{tpu_custom_call.1} parent=63 // pred_region
          %s638 = sand.u32 %s152, 1
          %s639 = scalar_lea.sflag [#allocation4], %s638
          %s640 = sand.u32 %s152, 1
          %s641 = smul.addr %s640, 8
          %s642 = scalar_lea.vmem [#allocation9], %s641
          %643 = dma.done %s639, 128
        $region68: #{tpu_custom_call.1} parent=63 // pred_fallthru
          _
      $region64: #{tpu_custom_call.1} parent=5 // pred_fallthru
        _
    $region6: #{tpu_custom_call.1} parent=1 // loop_footer
      %s22 = sadd.s32 1, %s18
    $region7: #{tpu_custom_call.1} parent=1 // loop_footer_branch
      %17 = sbr.rel target = $region3
    $region8: #{tpu_custom_call.1} parent=1 // loop_exit
      _
    %644 = vsyncpa [#allocation3], 1
    %s645 = scalar_lea.sflag [#allocation3], 1
    %646 = vsyncpa %s645, 1
    %647 = vsyncpa [#allocation6], 1
    %648 = vsyncpa [#allocation4], 1
    %s649 = scalar_lea.sflag [#allocation4], 1
    %650 = vsyncpa %s649, 1

</llo_original>
